<compile_context>
chip_gen: v6e
topology: v6e:2x2x1
jax: 0.10.0
libtpu: 0.0.40
codegen_flags: <defaults>
</compile_context>

<pallas_src>
import jax
import jax.numpy as jnp
from jax.experimental import pallas as pl
from jax.experimental.pallas import tpu as pltpu


def romoe_kernel(x_ref, y_ref, z_ref, wf1_ref, bf1_ref, w2_ref, b2_ref, out_ref):
    """Single grid step; the 3 channels are statically unrolled.

    x_ref/y_ref/z_ref : [B, D]           per-channel inputs
    wf1_ref           : [3, D, K*H + K]  fused (selected-expert fc1 || gate) weights
    bf1_ref           : [3, 1, K*H + K]  fused fc1 bias (gate columns are zero)
    w2_ref            : [3, K*H, K*E]    block-diagonal selected-expert fc2 weights
    b2_ref            : [3, 1, K*E]      selected-expert fc2 bias
    out_ref           : [B, 3*E]
    """
    KH = w2_ref.shape[1]            # K * H
    KE = w2_ref.shape[2]            # K * E
    K = wf1_ref.shape[2] - KH       # number of selected experts (= NE // 2)
    E = KE // K

    outs = []
    for c, x in enumerate((x_ref[...], y_ref[...], z_ref[...])):
        # Fused fc1 (all K selected experts) + gating logits: one MXU push.
        t = jnp.dot(x, wf1_ref[c], preferred_element_type=jnp.float32) + bf1_ref[c]
        # ReLU on the expert columns; Dropout(0.5) is identity in eval mode.
        # TODO(synk): training-mode dropout not reproduced (inference forward only).
        h = jnp.maximum(t[:, :KH], 0.0)                      # [B, K*H]
        logits = t[:, KH:]                                   # [B, K]

        # softmax(x @ Wg[c], dim=1); reciprocal on the EUP slot (free).
        m = jnp.max(logits, axis=-1, keepdims=True)
        e = jnp.exp(logits - m)
        gates = e * pl.reciprocal(jnp.sum(e, axis=-1, keepdims=True), approx=True)

        # fc2 of all K selected experts in one block-diagonal MXU push.
        o = jnp.dot(h, w2_ref[c], preferred_element_type=jnp.float32) + b2_ref[c]

        acc = jnp.zeros((x.shape[0], E), jnp.float32)
        for kk in range(K):          # K is tiny -> fully unrolled, static slices
            acc = acc + gates[:, kk:kk + 1] * o[:, kk * E:(kk + 1) * E]
        outs.append(acc)

    # One contiguous store  ==  torch.cat([out_x, out_y, out_z], dim=1).
    # (3*E = 48 < 128 lanes: lane-dense padding only pays off if experts_out scales.)
    out_ref[...] = jnp.concatenate(outs, axis=-1).astype(out_ref.dtype)


def romoe_forward(x, y, z, params, sel):
    """Pallas RoMoE forward. Returns [B, 3 * experts_out]."""
    W1, b1, W2, b2, Wg = params
    B, D = x.shape
    NE, _, H = W1.shape
    E = W2.shape[-1]
    C, _, K = Wg.shape  # C == 3 channels

    # ---- Wrapper-side weight fusion (pure weight prep; constant-foldable /
    # hoistable out of the hot path since sel is fixed) ----
    W1s = W1[sel]                      # [3, K, D, H]
    b1s = b1[sel][:, :, 0, :]          # [3, K, H]
    W2s = W2[sel]                      # [3, K, H, E]
    b2s = b2[sel][:, :, 0, :]          # [3, K, E]

    # fc1 of the K selected experts laid out as columns (kk*H + h), then the K
    # gate columns appended -> one matmul does fc1 + gating per channel.
    Wf1 = jnp.concatenate(
        [jnp.transpose(W1s, (0, 2, 1, 3)).reshape(C, D, K * H), Wg], axis=-1)
    bf1 = jnp.concatenate(
        [b1s.reshape(C, 1, K * H), jnp.zeros((C, 1, K), W1.dtype)], axis=-1)

    # Block-diagonal fc2: rows kk*H + h, cols kk*E + e hold W2[sel[c,kk]].
    eye = jnp.eye(K, dtype=W2.dtype)
    W2blk = (eye[None, :, None, :, None] * W2s[:, :, :, None, :]).reshape(
        C, K * H, K * E)
    b2f = b2s.reshape(C, 1, K * E)

    cost = pl.CostEstimate(
        flops=2 * C * B * (D * (K * H + K) + (K * H) * (K * E)),
        transcendentals=C * B * (K + 1),
        bytes_accessed=4 * (C * B * D + Wf1.size + bf1.size + W2blk.size
                            + b2f.size + B * C * E),
    )

    # No grid: one invocation, full arrays VMEM-resident (total ~55 KB, far
    # under VMEM on v5e/v6e/v7x — no tiling / vmem_limit tuning needed).
    out = pl.pallas_call(
        romoe_kernel,
        out_shape=jax.ShapeDtypeStruct((B, C * E), jnp.float32),
        cost_estimate=cost,
    )(x.astype(jnp.float32), y.astype(jnp.float32), z.astype(jnp.float32),
      Wf1, bf1, W2blk, b2f)
    return out


def romoe_ref(x, y, z, params, sel):
    """Pure-JAX reference of the same deterministic forward (raw weights)."""
    W1, b1, W2, b2, Wg = params
    K = Wg.shape[-1]
    outs = []
    for c, inp in enumerate([x, y, z]):
        gates = jax.nn.softmax(inp @ Wg[c], axis=1)  # [B, K]
        acc = jnp.zeros((inp.shape[0], W2.shape[-1]), jnp.float32)
        for kk in range(K):
            e = int(sel[c, kk])
            h = jnp.maximum(inp @ W1[e] + b1[e, 0], 0.0)
            o = h @ W2[e] + b2[e, 0]
            acc = acc + gates[:, kk:kk + 1] * o
        outs.append(acc)
    return jnp.concatenate(outs, axis=1)


if __name__ == "__main__":
    # Small shapes consistent with the module's forward.
    B = 8                 # batch
    input_size = 32       # D
    num_experts = 4       # NE
    experts_out = 16      # E
    experts_hidden = 32   # H
    channels = 3          # forward uses w_gates[0..2]
    K = num_experts // 2

    key = jax.random.PRNGKey(0)
    keys = jax.random.split(key, 10)

    # Deterministic parameter init (shapes per Expert / RoMoE __init__).
    W1 = jax.random.normal(keys[0], (num_experts, input_size, experts_hidden),
                           jnp.float32) * 0.1
    b1 = jax.random.normal(keys[1], (num_experts, 1, experts_hidden),
                           jnp.float32) * 0.1
    W2 = jax.random.normal(keys[2], (num_experts, experts_hidden, experts_out),
                           jnp.float32) * 0.1
    b2 = jax.random.normal(keys[3], (num_experts, 1, experts_out),
                           jnp.float32) * 0.1
    Wg = jax.random.normal(keys[4], (channels, input_size, K), jnp.float32)

    # Deterministic "random.sample": K distinct expert ids per channel.
    sel = jnp.stack([
        jax.random.permutation(keys[5 + c], num_experts)[:K]
        for c in range(channels)
    ]).astype(jnp.int32)  # [3, K]

    x = jax.random.normal(keys[8], (B, input_size), jnp.float32)
    yz_key1, yz_key2 = jax.random.split(keys[9])
    y = jax.random.normal(yz_key1, (B, input_size), jnp.float32)
    z = jax.random.normal(yz_key2, (B, input_size), jnp.float32)

    params = (W1, b1, W2, b2, Wg)

    out = romoe_forward(x, y, z, params, sel)
    out = jax.block_until_ready(out)

    ref = romoe_ref(x, y, z, params, sel)
    assert out.shape == (B, 3 * experts_out), out.shape
    # Tolerance loosened slightly vs exact: softmax normalization uses the
    # hardware approximate reciprocal (pl.reciprocal(..., approx=True)).
    assert jnp.allclose(out, ref, atol=2e-3, rtol=2e-3), (
        float(jnp.max(jnp.abs(out - ref))))

    print("KERNEL_OK")
</pallas_src>

<mosaic_0001>
module attributes {stable_mosaic.version = 11 : i64} {
  func.func @romoe_kernel(%arg0: memref<8x32xf32, #tpu.memory_space<vmem>>, %arg1: memref<8x32xf32, #tpu.memory_space<vmem>>, %arg2: memref<8x32xf32, #tpu.memory_space<vmem>>, %arg3: memref<3x32x66xf32, #tpu.memory_space<vmem>>, %arg4: memref<3x1x66xf32, #tpu.memory_space<vmem>>, %arg5: memref<3x64x32xf32, #tpu.memory_space<vmem>>, %arg6: memref<3x1x32xf32, #tpu.memory_space<vmem>>, %arg7: memref<8x48xf32, #tpu.memory_space<vmem>>) attributes {dimension_semantics = [], scalar_prefetch = 0 : i64, scratch_operands = 0 : i64, tpu.core_type = #tpu.core_type<tc>} {
    %c0 = arith.constant 0 : index
    %c0_0 = arith.constant 0 : index
    %0 = vector.load %arg0[%c0, %c0_0] : memref<8x32xf32, #tpu.memory_space<vmem>>, vector<8x32xf32>
    %c0_1 = arith.constant 0 : index
    %c0_2 = arith.constant 0 : index
    %1 = vector.load %arg1[%c0_1, %c0_2] : memref<8x32xf32, #tpu.memory_space<vmem>>, vector<8x32xf32>
    %c0_3 = arith.constant 0 : index
    %c0_4 = arith.constant 0 : index
    %2 = vector.load %arg2[%c0_3, %c0_4] : memref<8x32xf32, #tpu.memory_space<vmem>>, vector<8x32xf32>
    %c0_5 = arith.constant 0 : index
    %c0_6 = arith.constant 0 : index
    %c0_7 = arith.constant 0 : index
    %3 = vector.load %arg3[%c0_5, %c0_6, %c0_7] : memref<3x32x66xf32, #tpu.memory_space<vmem>>, vector<1x32x66xf32>
    %4 = vector.shape_cast %3 : vector<1x32x66xf32> to vector<32x66xf32>
    %cst = arith.constant dense<0.000000e+00> : vector<8x66xf32>
    %5 = tpu.matmul %0, %4, %cst {dimension_numbers = #tpu.dot_dimension_numbers<[1], [0], [0], [1], [0, 0, 1, 1], [], []>} : vector<8x32xf32>, vector<32x66xf32>, vector<8x66xf32> -> vector<8x66xf32>
    %c0_8 = arith.constant 0 : index
    %c0_9 = arith.constant 0 : index
    %c0_10 = arith.constant 0 : index
    %6 = vector.load %arg4[%c0_8, %c0_9, %c0_10] : memref<3x1x66xf32, #tpu.memory_space<vmem>>, vector<1x1x66xf32>
    %7 = vector.shape_cast %6 : vector<1x1x66xf32> to vector<1x66xf32>
    %8 = vector.broadcast %7 : vector<1x66xf32> to vector<8x66xf32>
    %9 = arith.addf %5, %8 : vector<8x66xf32>
    %10 = vector.extract_strided_slice %9 {offsets = [0, 0], sizes = [8, 64], strides = [1, 1]} : vector<8x66xf32> to vector<8x64xf32>
    %cst_11 = arith.constant 0.000000e+00 : f32
    %11 = vector.broadcast %cst_11 : f32 to vector<8x64xf32>
    %12 = arith.maximumf %10, %11 : vector<8x64xf32>
    %13 = vector.extract_strided_slice %9 {offsets = [0, 64], sizes = [8, 2], strides = [1, 1]} : vector<8x66xf32> to vector<8x2xf32>
    %cst_12 = arith.constant dense<0xFF800000> : vector<8xf32>
    %14 = vector.multi_reduction <maximumf>, %13, %cst_12 [1] : vector<8x2xf32> to vector<8xf32>
    %15 = vector.shape_cast %14 : vector<8xf32> to vector<8x1xf32>
    %16 = vector.broadcast %15 : vector<8x1xf32> to vector<8x2xf32>
    %17 = arith.subf %13, %16 : vector<8x2xf32>
    %18 = math.exp %17 : vector<8x2xf32>
    %cst_13 = arith.constant dense<0.000000e+00> : vector<8xf32>
    %19 = vector.multi_reduction <add>, %18, %cst_13 [1] : vector<8x2xf32> to vector<8xf32>
    %20 = vector.shape_cast %19 : vector<8xf32> to vector<8x1xf32>
    %21 = tpu.reciprocal %20 {approx = true} : vector<8x1xf32> -> vector<8x1xf32>
    %22 = vector.broadcast %21 : vector<8x1xf32> to vector<8x2xf32>
    %23 = arith.mulf %18, %22 : vector<8x2xf32>
    %c0_14 = arith.constant 0 : index
    %c0_15 = arith.constant 0 : index
    %c0_16 = arith.constant 0 : index
    %24 = vector.load %arg5[%c0_14, %c0_15, %c0_16] : memref<3x64x32xf32, #tpu.memory_space<vmem>>, vector<1x64x32xf32>
    %25 = vector.shape_cast %24 : vector<1x64x32xf32> to vector<64x32xf32>
    %cst_17 = arith.constant dense<0.000000e+00> : vector<8x32xf32>
    %26 = tpu.matmul %12, %25, %cst_17 {dimension_numbers = #tpu.dot_dimension_numbers<[1], [0], [0], [1], [0, 0, 1, 1], [], []>} : vector<8x64xf32>, vector<64x32xf32>, vector<8x32xf32> -> vector<8x32xf32>
    %c0_18 = arith.constant 0 : index
    %c0_19 = arith.constant 0 : index
    %c0_20 = arith.constant 0 : index
    %27 = vector.load %arg6[%c0_18, %c0_19, %c0_20] : memref<3x1x32xf32, #tpu.memory_space<vmem>>, vector<1x1x32xf32>
    %28 = vector.shape_cast %27 : vector<1x1x32xf32> to vector<1x32xf32>
    %29 = vector.broadcast %28 : vector<1x32xf32> to vector<8x32xf32>
    %30 = arith.addf %26, %29 : vector<8x32xf32>
    %cst_21 = arith.constant 0.000000e+00 : f32
    %31 = vector.broadcast %cst_21 : f32 to vector<8x16xf32>
    %32 = vector.extract_strided_slice %23 {offsets = [0, 0], sizes = [8, 1], strides = [1, 1]} : vector<8x2xf32> to vector<8x1xf32>
    %33 = vector.extract_strided_slice %30 {offsets = [0, 0], sizes = [8, 16], strides = [1, 1]} : vector<8x32xf32> to vector<8x16xf32>
    %34 = vector.broadcast %32 : vector<8x1xf32> to vector<8x16xf32>
    %35 = arith.mulf %34, %33 : vector<8x16xf32>
    %36 = arith.addf %31, %35 : vector<8x16xf32>
    %37 = vector.extract_strided_slice %23 {offsets = [0, 1], sizes = [8, 1], strides = [1, 1]} : vector<8x2xf32> to vector<8x1xf32>
    %38 = vector.extract_strided_slice %30 {offsets = [0, 16], sizes = [8, 16], strides = [1, 1]} : vector<8x32xf32> to vector<8x16xf32>
    %39 = vector.broadcast %37 : vector<8x1xf32> to vector<8x16xf32>
    %40 = arith.mulf %39, %38 : vector<8x16xf32>
    %41 = arith.addf %36, %40 : vector<8x16xf32>
    %c1 = arith.constant 1 : index
    %c0_22 = arith.constant 0 : index
    %c0_23 = arith.constant 0 : index
    %42 = vector.load %arg3[%c1, %c0_22, %c0_23] : memref<3x32x66xf32, #tpu.memory_space<vmem>>, vector<1x32x66xf32>
    %43 = vector.shape_cast %42 : vector<1x32x66xf32> to vector<32x66xf32>
    %cst_24 = arith.constant dense<0.000000e+00> : vector<8x66xf32>
    %44 = tpu.matmul %1, %43, %cst_24 {dimension_numbers = #tpu.dot_dimension_numbers<[1], [0], [0], [1], [0, 0, 1, 1], [], []>} : vector<8x32xf32>, vector<32x66xf32>, vector<8x66xf32> -> vector<8x66xf32>
    %c1_25 = arith.constant 1 : index
    %c0_26 = arith.constant 0 : index
    %c0_27 = arith.constant 0 : index
    %45 = vector.load %arg4[%c1_25, %c0_26, %c0_27] : memref<3x1x66xf32, #tpu.memory_space<vmem>>, vector<1x1x66xf32>
    %46 = vector.shape_cast %45 : vector<1x1x66xf32> to vector<1x66xf32>
    %47 = vector.broadcast %46 : vector<1x66xf32> to vector<8x66xf32>
    %48 = arith.addf %44, %47 : vector<8x66xf32>
    %49 = vector.extract_strided_slice %48 {offsets = [0, 0], sizes = [8, 64], strides = [1, 1]} : vector<8x66xf32> to vector<8x64xf32>
    %cst_28 = arith.constant 0.000000e+00 : f32
    %50 = vector.broadcast %cst_28 : f32 to vector<8x64xf32>
    %51 = arith.maximumf %49, %50 : vector<8x64xf32>
    %52 = vector.extract_strided_slice %48 {offsets = [0, 64], sizes = [8, 2], strides = [1, 1]} : vector<8x66xf32> to vector<8x2xf32>
    %cst_29 = arith.constant dense<0xFF800000> : vector<8xf32>
    %53 = vector.multi_reduction <maximumf>, %52, %cst_29 [1] : vector<8x2xf32> to vector<8xf32>
    %54 = vector.shape_cast %53 : vector<8xf32> to vector<8x1xf32>
    %55 = vector.broadcast %54 : vector<8x1xf32> to vector<8x2xf32>
    %56 = arith.subf %52, %55 : vector<8x2xf32>
    %57 = math.exp %56 : vector<8x2xf32>
    %cst_30 = arith.constant dense<0.000000e+00> : vector<8xf32>
    %58 = vector.multi_reduction <add>, %57, %cst_30 [1] : vector<8x2xf32> to vector<8xf32>
    %59 = vector.shape_cast %58 : vector<8xf32> to vector<8x1xf32>
    %60 = tpu.reciprocal %59 {approx = true} : vector<8x1xf32> -> vector<8x1xf32>
    %61 = vector.broadcast %60 : vector<8x1xf32> to vector<8x2xf32>
    %62 = arith.mulf %57, %61 : vector<8x2xf32>
    %c1_31 = arith.constant 1 : index
    %c0_32 = arith.constant 0 : index
    %c0_33 = arith.constant 0 : index
    %63 = vector.load %arg5[%c1_31, %c0_32, %c0_33] : memref<3x64x32xf32, #tpu.memory_space<vmem>>, vector<1x64x32xf32>
    %64 = vector.shape_cast %63 : vector<1x64x32xf32> to vector<64x32xf32>
    %cst_34 = arith.constant dense<0.000000e+00> : vector<8x32xf32>
    %65 = tpu.matmul %51, %64, %cst_34 {dimension_numbers = #tpu.dot_dimension_numbers<[1], [0], [0], [1], [0, 0, 1, 1], [], []>} : vector<8x64xf32>, vector<64x32xf32>, vector<8x32xf32> -> vector<8x32xf32>
    %c1_35 = arith.constant 1 : index
    %c0_36 = arith.constant 0 : index
    %c0_37 = arith.constant 0 : index
    %66 = vector.load %arg6[%c1_35, %c0_36, %c0_37] : memref<3x1x32xf32, #tpu.memory_space<vmem>>, vector<1x1x32xf32>
    %67 = vector.shape_cast %66 : vector<1x1x32xf32> to vector<1x32xf32>
    %68 = vector.broadcast %67 : vector<1x32xf32> to vector<8x32xf32>
    %69 = arith.addf %65, %68 : vector<8x32xf32>
    %cst_38 = arith.constant 0.000000e+00 : f32
    %70 = vector.broadcast %cst_38 : f32 to vector<8x16xf32>
    %71 = vector.extract_strided_slice %62 {offsets = [0, 0], sizes = [8, 1], strides = [1, 1]} : vector<8x2xf32> to vector<8x1xf32>
    %72 = vector.extract_strided_slice %69 {offsets = [0, 0], sizes = [8, 16], strides = [1, 1]} : vector<8x32xf32> to vector<8x16xf32>
    %73 = vector.broadcast %71 : vector<8x1xf32> to vector<8x16xf32>
    %74 = arith.mulf %73, %72 : vector<8x16xf32>
    %75 = arith.addf %70, %74 : vector<8x16xf32>
    %76 = vector.extract_strided_slice %62 {offsets = [0, 1], sizes = [8, 1], strides = [1, 1]} : vector<8x2xf32> to vector<8x1xf32>
    %77 = vector.extract_strided_slice %69 {offsets = [0, 16], sizes = [8, 16], strides = [1, 1]} : vector<8x32xf32> to vector<8x16xf32>
    %78 = vector.broadcast %76 : vector<8x1xf32> to vector<8x16xf32>
    %79 = arith.mulf %78, %77 : vector<8x16xf32>
    %80 = arith.addf %75, %79 : vector<8x16xf32>
    %c2 = arith.constant 2 : index
    %c0_39 = arith.constant 0 : index
    %c0_40 = arith.constant 0 : index
    %81 = vector.load %arg3[%c2, %c0_39, %c0_40] : memref<3x32x66xf32, #tpu.memory_space<vmem>>, vector<1x32x66xf32>
    %82 = vector.shape_cast %81 : vector<1x32x66xf32> to vector<32x66xf32>
    %cst_41 = arith.constant dense<0.000000e+00> : vector<8x66xf32>
    %83 = tpu.matmul %2, %82, %cst_41 {dimension_numbers = #tpu.dot_dimension_numbers<[1], [0], [0], [1], [0, 0, 1, 1], [], []>} : vector<8x32xf32>, vector<32x66xf32>, vector<8x66xf32> -> vector<8x66xf32>
    %c2_42 = arith.constant 2 : index
    %c0_43 = arith.constant 0 : index
    %c0_44 = arith.constant 0 : index
    %84 = vector.load %arg4[%c2_42, %c0_43, %c0_44] : memref<3x1x66xf32, #tpu.memory_space<vmem>>, vector<1x1x66xf32>
    %85 = vector.shape_cast %84 : vector<1x1x66xf32> to vector<1x66xf32>
    %86 = vector.broadcast %85 : vector<1x66xf32> to vector<8x66xf32>
    %87 = arith.addf %83, %86 : vector<8x66xf32>
    %88 = vector.extract_strided_slice %87 {offsets = [0, 0], sizes = [8, 64], strides = [1, 1]} : vector<8x66xf32> to vector<8x64xf32>
    %cst_45 = arith.constant 0.000000e+00 : f32
    %89 = vector.broadcast %cst_45 : f32 to vector<8x64xf32>
    %90 = arith.maximumf %88, %89 : vector<8x64xf32>
    %91 = vector.extract_strided_slice %87 {offsets = [0, 64], sizes = [8, 2], strides = [1, 1]} : vector<8x66xf32> to vector<8x2xf32>
    %cst_46 = arith.constant dense<0xFF800000> : vector<8xf32>
    %92 = vector.multi_reduction <maximumf>, %91, %cst_46 [1] : vector<8x2xf32> to vector<8xf32>
    %93 = vector.shape_cast %92 : vector<8xf32> to vector<8x1xf32>
    %94 = vector.broadcast %93 : vector<8x1xf32> to vector<8x2xf32>
    %95 = arith.subf %91, %94 : vector<8x2xf32>
    %96 = math.exp %95 : vector<8x2xf32>
    %cst_47 = arith.constant dense<0.000000e+00> : vector<8xf32>
    %97 = vector.multi_reduction <add>, %96, %cst_47 [1] : vector<8x2xf32> to vector<8xf32>
    %98 = vector.shape_cast %97 : vector<8xf32> to vector<8x1xf32>
    %99 = tpu.reciprocal %98 {approx = true} : vector<8x1xf32> -> vector<8x1xf32>
    %100 = vector.broadcast %99 : vector<8x1xf32> to vector<8x2xf32>
    %101 = arith.mulf %96, %100 : vector<8x2xf32>
    %c2_48 = arith.constant 2 : index
    %c0_49 = arith.constant 0 : index
    %c0_50 = arith.constant 0 : index
    %102 = vector.load %arg5[%c2_48, %c0_49, %c0_50] : memref<3x64x32xf32, #tpu.memory_space<vmem>>, vector<1x64x32xf32>
    %103 = vector.shape_cast %102 : vector<1x64x32xf32> to vector<64x32xf32>
    %cst_51 = arith.constant dense<0.000000e+00> : vector<8x32xf32>
    %104 = tpu.matmul %90, %103, %cst_51 {dimension_numbers = #tpu.dot_dimension_numbers<[1], [0], [0], [1], [0, 0, 1, 1], [], []>} : vector<8x64xf32>, vector<64x32xf32>, vector<8x32xf32> -> vector<8x32xf32>
    %c2_52 = arith.constant 2 : index
    %c0_53 = arith.constant 0 : index
    %c0_54 = arith.constant 0 : index
    %105 = vector.load %arg6[%c2_52, %c0_53, %c0_54] : memref<3x1x32xf32, #tpu.memory_space<vmem>>, vector<1x1x32xf32>
    %106 = vector.shape_cast %105 : vector<1x1x32xf32> to vector<1x32xf32>
    %107 = vector.broadcast %106 : vector<1x32xf32> to vector<8x32xf32>
    %108 = arith.addf %104, %107 : vector<8x32xf32>
    %cst_55 = arith.constant 0.000000e+00 : f32
    %109 = vector.broadcast %cst_55 : f32 to vector<8x16xf32>
    %110 = vector.extract_strided_slice %101 {offsets = [0, 0], sizes = [8, 1], strides = [1, 1]} : vector<8x2xf32> to vector<8x1xf32>
    %111 = vector.extract_strided_slice %108 {offsets = [0, 0], sizes = [8, 16], strides = [1, 1]} : vector<8x32xf32> to vector<8x16xf32>
    %112 = vector.broadcast %110 : vector<8x1xf32> to vector<8x16xf32>
    %113 = arith.mulf %112, %111 : vector<8x16xf32>
    %114 = arith.addf %109, %113 : vector<8x16xf32>
    %115 = vector.extract_strided_slice %101 {offsets = [0, 1], sizes = [8, 1], strides = [1, 1]} : vector<8x2xf32> to vector<8x1xf32>
    %116 = vector.extract_strided_slice %108 {offsets = [0, 16], sizes = [8, 16], strides = [1, 1]} : vector<8x32xf32> to vector<8x16xf32>
    %117 = vector.broadcast %115 : vector<8x1xf32> to vector<8x16xf32>
    %118 = arith.mulf %117, %116 : vector<8x16xf32>
    %119 = arith.addf %114, %118 : vector<8x16xf32>
    %120 = tpu.concatenate %41, %80, %119 in 1 : vector<8x16xf32>, vector<8x16xf32>, vector<8x16xf32> -> vector<8x48xf32>
    %c0_56 = arith.constant 0 : index
    %c0_57 = arith.constant 0 : index
    %121 = vector.load %arg7[%c0_56, %c0_57] : memref<8x48xf32, #tpu.memory_space<vmem>>, vector<8x48xf32>
    tpu.vector_store %arg7[%c0_56, %c0_57], %120 {strides = array<i32>} : memref<8x48xf32, #tpu.memory_space<vmem>>, vector<8x48xf32>,
    return
  }
}

</mosaic_0001>

<llo_original>
// kernel: tpu_custom_call.1
$region0: #{tpu_custom_call.1}
  #allocation0 [shape = 'u32[]', space=smem, size = 0x4, offset = 0x4, fixed_abs, tag = 'smem constant byte address 0x4 - core index']
  #allocation1 [shape = 'u32[144,128]{1,0:T(1,128)}', space=vmem, size = 0x12000, scoped, tag = 'internal scratch']
  %s0 = inlined_call_operand.vmem [shape: f32[8,32], index: 0, kind: input, shape index: {}]
  %s1 = inlined_call_operand.vmem [shape: f32[8,32], index: 1, kind: input, shape index: {}]
  %s2 = inlined_call_operand.vmem [shape: f32[8,32], index: 2, kind: input, shape index: {}]
  %s3 = inlined_call_operand.vmem [shape: f32[3,32,66], index: 3, kind: input, shape index: {}]
  %s4 = inlined_call_operand.vmem [shape: f32[3,1,66], index: 4, kind: input, shape index: {}]
  %s5 = inlined_call_operand.vmem [shape: f32[3,64,32], index: 5, kind: input, shape index: {}]
  %s6 = inlined_call_operand.vmem [shape: f32[3,1,32], index: 6, kind: input, shape index: {}]
  %s7 = inlined_call_operand.hbm [shape: f32[8,48], index: 7, kind: output, shape index: {}]
  %s8 = sld [smem:[#allocation0]]
  $region38: #{tpu_custom_call.1} parent=0
    _
  %s10 = ssub.s32 1, %s8
  %s11 = scalar_select 0, %s10, %s8
  $region1: #{tpu_custom_call.1} parent=0
    #allocation2 [shape = 'u8[4096]{0}', space=vmem, size = 0x1000, scoped, tag = 'output window, operand 0, single buffered']
    #allocation3 [shape = 's32[1]{0}', space=sflag, size = 0x4, scoped, tag = 'scoped memory for tpu_custom_call.1']
    %12 = vsyncpa [#allocation3], 0
    // Predicated region
    $region2: #{tpu_custom_call.1} parent=1 // pred_check
      _
    $region3: #{tpu_custom_call.1} parent=1 // pred_check_branch
      %14 = sbr.rel (0) target = $region5
    $region4: #{tpu_custom_call.1} parent=1 // pred_region
      _
    $region5: #{tpu_custom_call.1} parent=1 // pred_fallthru
      _
    // Predicated region
    $region6: #{tpu_custom_call.1} parent=1 // pred_check
      _
    $region7: #{tpu_custom_call.1} parent=1 // pred_check_branch
      %16 = sbr.rel (0) target = $region9
    $region8: #{tpu_custom_call.1} parent=1 // pred_region
      _
    $region9: #{tpu_custom_call.1} parent=1 // pred_fallthru
      _
    // Predicated region
    $region10: #{tpu_custom_call.1} parent=1 // pred_check
      _
    $region11: #{tpu_custom_call.1} parent=1 // pred_check_branch
      %18 = sbr.rel (0) target = $region13
    $region12: #{tpu_custom_call.1} parent=1 // pred_region
      _
    $region13: #{tpu_custom_call.1} parent=1 // pred_fallthru
      _
    // Predicated region
    $region14: #{tpu_custom_call.1} parent=1 // pred_check
      _
    $region15: #{tpu_custom_call.1} parent=1 // pred_check_branch
      %20 = sbr.rel (0) target = $region17
    $region16: #{tpu_custom_call.1} parent=1 // pred_region
      _
    $region17: #{tpu_custom_call.1} parent=1 // pred_fallthru
      _
    // Predicated region
    $region18: #{tpu_custom_call.1} parent=1 // pred_check
      _
    $region19: #{tpu_custom_call.1} parent=1 // pred_check_branch
      %22 = sbr.rel (0) target = $region21
    $region20: #{tpu_custom_call.1} parent=1 // pred_region
      _
    $region21: #{tpu_custom_call.1} parent=1 // pred_fallthru
      _
    // Predicated region
    $region22: #{tpu_custom_call.1} parent=1 // pred_check
      _
    $region23: #{tpu_custom_call.1} parent=1 // pred_check_branch
      %24 = sbr.rel (0) target = $region25
    $region24: #{tpu_custom_call.1} parent=1 // pred_region
      _
    $region25: #{tpu_custom_call.1} parent=1 // pred_fallthru
      _
    // Predicated region
    $region26: #{tpu_custom_call.1} parent=1 // pred_check
      _
    $region27: #{tpu_custom_call.1} parent=1 // pred_check_branch
      %26 = sbr.rel (0) target = $region29
    $region28: #{tpu_custom_call.1} parent=1 // pred_region
      _
    $region29: #{tpu_custom_call.1} parent=1 // pred_fallthru
      _
    %v27 = vld [vmem:[%s0] sm:$0xff]
    %v28 = vld [vmem:[%s1] sm:$0xff]
    %v29 = vld [vmem:[%s2] sm:$0xff]
    %v30 = vld [vmem:[%s3] sm:$0xff]
    %v31 = vld [vmem:[%s3 + $0x8] sm:$0xff]
    %v32 = vld [vmem:[%s3 + $0x10] sm:$0xff]
    %v33 = vld [vmem:[%s3 + $0x18] sm:$0xff]
    %v34 = vld [vmem:[%s4] sm:$0x1]
    %v36 = vlaneseq
    %v37 = vshrl.u32 %v36, 7
    %v38 = vsub.s32 0, %v37
    %v39 = vrot.slane %v34, %v38
    %vm41 = vcmask 261120
    %v43 = vsel %vm41, %v27, 0
    %45 = vmatprep.subr.mxu0 0.0
    %46 = vmatpush1.msra.mxu0 0.0
    %47 = vmatprep.subr.mxu0 0.0
    %48 = vmatpush1.msra.mxu0 0.0
    %49 = vmatprep.subr.mxu0 0.0
    %50 = vmatpush1.msra.mxu0 0.0
    %51 = vmatprep.subr.mxu0 0.0
    %52 = vmatpush1.msra.mxu0 0.0
    %53 = vmatprep.subr.mxu0 0.0
    %54 = vmatpush1.msra.mxu0 0.0
    %55 = vmatprep.subr.mxu0 0.0
    %56 = vmatpush1.msra.mxu0 0.0
    %57 = vmatprep.subr.mxu0 0.0
    %58 = vmatpush1.msra.mxu0 0.0
    %59 = vmatprep.subr.mxu0 0.0
    %60 = vmatpush1.msra.mxu0 0.0
    %61 = vmatprep.subr.mxu0 0.0
    %62 = vmatpush1.msra.mxu0 0.0
    %63 = vmatprep.subr.mxu0 0.0
    %64 = vmatpush1.msra.mxu0 0.0
    %65 = vmatprep.subr.mxu0 0.0
    %66 = vmatpush1.msra.mxu0 0.0
    %67 = vmatprep.subr.mxu0 0.0
    %68 = vmatpush1.msra.mxu0 0.0
    %69 = vmatprep.subr.mxu0 0.0
    %70 = vmatpush1.msra.mxu0 %v33
    %71 = vmatprep.subr.mxu0 0.0
    %72 = vmatpush1.msra.mxu0 %v32
    %73 = vmatprep.subr.mxu0 0.0
    %74 = vmatpush1.msra.mxu0 %v31
    %75 = vmatprep.subr.mxu0 0.0
    %76 = vmatpush1.msra.mxu0 %v30
    %77 = vmatprep.subr.mxu0 0.0
    %78 = vmatpush2.msra.mxu0 0.0
    %79 = vmatprep.subr.mxu0 0.0
    %80 = vmatpush2.msra.mxu0 0.0
    %81 = vmatprep.subr.mxu0 0.0
    %82 = vmatpush2.msra.mxu0 0.0
    %83 = vmatprep.subr.mxu0 0.0
    %84 = vmatpush2.msra.mxu0 0.0
    %85 = vmatprep.subr.mxu0 0.0
    %86 = vmatpush2.msra.mxu0 0.0
    %87 = vmatprep.subr.mxu0 0.0
    %88 = vmatpush2.msra.mxu0 0.0
    %89 = vmatprep.subr.mxu0 0.0
    %90 = vmatpush2.msra.mxu0 0.0
    %91 = vmatprep.subr.mxu0 0.0
    %92 = vmatpush2.msra.mxu0 0.0
    %93 = vmatprep.subr.mxu0 0.0
    %94 = vmatpush2.msra.mxu0 0.0
    %95 = vmatprep.subr.mxu0 0.0
    %96 = vmatpush2.msra.mxu0 0.0
    %97 = vmatprep.subr.mxu0 0.0
    %98 = vmatpush2.msra.mxu0 0.0
    %99 = vmatprep.subr.mxu0 0.0
    %100 = vmatpush2.msra.mxu0 0.0
    %101 = vmatprep.subr.mxu0 0.0
    %102 = vmatpush2.msra.mxu0 0.0
    %103 = vmatprep.subr.mxu0 0.0
    %104 = vmatpush2.msra.mxu0 0.0
    %105 = vmatprep.subr.mxu0 0.0
    %106 = vmatpush2.msra.mxu0 0.0
    %107 = vmatprep.subr.mxu0 0.0
    %108 = vmatpush2.msra.mxu0 0.0
    %109 = vmatprep.mubr.f32.mxu0 0.0
    %110 = vmatmul.mubr.f32.gmra.mxu0 %v43
    %v111 = vpop.f32.mrf.mxu0
    %v112 = vadd.f32 %v39, %v111
    %v113 = vpop.f32.mrf.mxu0
    %114 = vdwg.mxu0
    %v115 = vmax.f32 %v112, 0.0
    %vm116 = vcmask 540160
    %v117 = vsel %vm116, %v112, -inf
    %118 = vmax.xlane.f32.xlu0 %v117
    %v119 = vpop.xlane.xlu0 %118
    %v120 = vsub.f32 %v112, %v119
    %v121 = vmul.f32 %v120, 1.442695
    %v122 = vpow.pop %v121
    %124 = vrot.lane.b32.xlu0 %v122, 64
    %v125 = vpop.permute.xlu0 %124
    %vm127 = vcmask 15360
    %v128 = vsel %vm127, %v125, 0.0
    %129 = vadd.xlane.f32.xlu0 %v128
    %v130 = vpop.xlane.xlu0 %129
    %v131 = vrcp.pop %v130
    %v132 = vmul.f32 %v122, %v131
    %v133 = vld [vmem:[%s5] sm:$0xff]
    %v134 = vld [vmem:[%s5 + $0x8] sm:$0xff]
    %v135 = vld [vmem:[%s5 + $0x10] sm:$0xff]
    %v136 = vld [vmem:[%s5 + $0x18] sm:$0xff]
    %v137 = vld [vmem:[%s5 + $0x20] sm:$0xff]
    %v138 = vld [vmem:[%s5 + $0x28] sm:$0xff]
    %v139 = vld [vmem:[%s5 + $0x30] sm:$0xff]
    %v140 = vld [vmem:[%s5 + $0x38] sm:$0xff]
    %v141 = vld [vmem:[%s6] sm:$0x1]
    %v143 = vlaneseq
    %v144 = vshrl.u32 %v143, 7
    %v145 = vsub.s32 0, %v144
    %v146 = vrot.slane %v141, %v145
    %vm148 = vcmask 523264
    %v150 = vsel %vm148, %v115, 0
    %152 = vmatprep.subr.mxu0 0.0
    %153 = vmatpush1.msra.mxu0 0.0
    %154 = vmatprep.subr.mxu0 0.0
    %155 = vmatpush1.msra.mxu0 0.0
    %156 = vmatprep.subr.mxu0 0.0
    %157 = vmatpush1.msra.mxu0 0.0
    %158 = vmatprep.subr.mxu0 0.0
    %159 = vmatpush1.msra.mxu0 0.0
    %160 = vmatprep.subr.mxu0 0.0
    %161 = vmatpush1.msra.mxu0 0.0
    %162 = vmatprep.subr.mxu0 0.0
    %163 = vmatpush1.msra.mxu0 0.0
    %164 = vmatprep.subr.mxu0 0.0
    %165 = vmatpush1.msra.mxu0 0.0
    %166 = vmatprep.subr.mxu0 0.0
    %167 = vmatpush1.msra.mxu0 0.0
    %168 = vmatprep.subr.mxu0 0.0
    %169 = vmatpush1.msra.mxu0 %v140
    %170 = vmatprep.subr.mxu0 0.0
    %171 = vmatpush1.msra.mxu0 %v139
    %172 = vmatprep.subr.mxu0 0.0
    %173 = vmatpush1.msra.mxu0 %v138
    %174 = vmatprep.subr.mxu0 0.0
    %175 = vmatpush1.msra.mxu0 %v137
    %176 = vmatprep.subr.mxu0 0.0
    %177 = vmatpush1.msra.mxu0 %v136
    %178 = vmatprep.subr.mxu0 0.0
    %179 = vmatpush1.msra.mxu0 %v135
    %180 = vmatprep.subr.mxu0 0.0
    %181 = vmatpush1.msra.mxu0 %v134
    %182 = vmatprep.subr.mxu0 0.0
    %183 = vmatpush1.msra.mxu0 %v133
    %184 = vmatprep.subr.mxu0 0.0
    %185 = vmatpush2.msra.mxu0 0.0
    %186 = vmatprep.subr.mxu0 0.0
    %187 = vmatpush2.msra.mxu0 0.0
    %188 = vmatprep.subr.mxu0 0.0
    %189 = vmatpush2.msra.mxu0 0.0
    %190 = vmatprep.subr.mxu0 0.0
    %191 = vmatpush2.msra.mxu0 0.0
    %192 = vmatprep.subr.mxu0 0.0
    %193 = vmatpush2.msra.mxu0 0.0
    %194 = vmatprep.subr.mxu0 0.0
    %195 = vmatpush2.msra.mxu0 0.0
    %196 = vmatprep.subr.mxu0 0.0
    %197 = vmatpush2.msra.mxu0 0.0
    %198 = vmatprep.subr.mxu0 0.0
    %199 = vmatpush2.msra.mxu0 0.0
    %200 = vmatprep.subr.mxu0 0.0
    %201 = vmatpush2.msra.mxu0 0.0
    %202 = vmatprep.subr.mxu0 0.0
    %203 = vmatpush2.msra.mxu0 0.0
    %204 = vmatprep.subr.mxu0 0.0
    %205 = vmatpush2.msra.mxu0 0.0
    %206 = vmatprep.subr.mxu0 0.0
    %207 = vmatpush2.msra.mxu0 0.0
    %208 = vmatprep.subr.mxu0 0.0
    %209 = vmatpush2.msra.mxu0 0.0
    %210 = vmatprep.subr.mxu0 0.0
    %211 = vmatpush2.msra.mxu0 0.0
    %212 = vmatprep.subr.mxu0 0.0
    %213 = vmatpush2.msra.mxu0 0.0
    %214 = vmatprep.subr.mxu0 0.0
    %215 = vmatpush2.msra.mxu0 0.0
    %216 = vmatprep.mubr.f32.mxu0 0.0
    %217 = vmatmul.mubr.f32.gmra.mxu0 %v150
    %v218 = vpop.f32.mrf.mxu0
    %v219 = vadd.f32 %v146, %v218
    %v220 = vpop.f32.mrf.mxu0
    %221 = vdwg.mxu0
    %223 = vset.pattern.permute.xlu0 64
    %224 = vperm.xlu0 %223, %v132
    %v225 = vpop.permute.xlu0 %224
    %v227 = vmul.f32 %v225, %v219
    %v228 = vadd.f32 %v227, 0.0
    %229 = vset.pattern.permute.xlu0 65
    %230 = vperm.xlu0 %229, %v132
    %v231 = vpop.permute.xlu0 %230
    %v233 = vmul.f32 %v231, %v219
    %235 = vrot.lane.b32.xlu0 %v233, 112
    %v236 = vpop.permute.xlu0 %235
    %v238 = vadd.f32 %v228, %v236
    %s239 = scalar_lea.vmem %s3, 32
    %v240 = vld [vmem:[%s239] sm:$0xff]
    %v241 = vld [vmem:[%s239 + $0x8] sm:$0xff]
    %v242 = vld [vmem:[%s239 + $0x10] sm:$0xff]
    %v243 = vld [vmem:[%s239 + $0x18] sm:$0xff]
    %s244 = scalar_lea.vmem %s4, 1
    %v245 = vld [vmem:[%s244] sm:$0x1]
    %v247 = vlaneseq
    %v248 = vshrl.u32 %v247, 7
    %v249 = vsub.s32 0, %v248
    %v250 = vrot.slane %v245, %v249
    %v253 = vsel %vm41, %v28, 0
    %255 = vmatprep.subr.mxu0 0.0
    %256 = vmatpush1.msra.mxu0 0.0
    %257 = vmatprep.subr.mxu0 0.0
    %258 = vmatpush1.msra.mxu0 0.0
    %259 = vmatprep.subr.mxu0 0.0
    %260 = vmatpush1.msra.mxu0 0.0
    %261 = vmatprep.subr.mxu0 0.0
    %262 = vmatpush1.msra.mxu0 0.0
    %263 = vmatprep.subr.mxu0 0.0
    %264 = vmatpush1.msra.mxu0 0.0
    %265 = vmatprep.subr.mxu0 0.0
    %266 = vmatpush1.msra.mxu0 0.0
    %267 = vmatprep.subr.mxu0 0.0
    %268 = vmatpush1.msra.mxu0 0.0
    %269 = vmatprep.subr.mxu0 0.0
    %270 = vmatpush1.msra.mxu0 0.0
    %271 = vmatprep.subr.mxu0 0.0
    %272 = vmatpush1.msra.mxu0 0.0
    %273 = vmatprep.subr.mxu0 0.0
    %274 = vmatpush1.msra.mxu0 0.0
    %275 = vmatprep.subr.mxu0 0.0
    %276 = vmatpush1.msra.mxu0 0.0
    %277 = vmatprep.subr.mxu0 0.0
    %278 = vmatpush1.msra.mxu0 0.0
    %279 = vmatprep.subr.mxu0 0.0
    %280 = vmatpush1.msra.mxu0 %v243
    %281 = vmatprep.subr.mxu0 0.0
    %282 = vmatpush1.msra.mxu0 %v242
    %283 = vmatprep.subr.mxu0 0.0
    %284 = vmatpush1.msra.mxu0 %v241
    %285 = vmatprep.subr.mxu0 0.0
    %286 = vmatpush1.msra.mxu0 %v240
    %287 = vmatprep.subr.mxu0 0.0
    %288 = vmatpush2.msra.mxu0 0.0
    %289 = vmatprep.subr.mxu0 0.0
    %290 = vmatpush2.msra.mxu0 0.0
    %291 = vmatprep.subr.mxu0 0.0
    %292 = vmatpush2.msra.mxu0 0.0
    %293 = vmatprep.subr.mxu0 0.0
    %294 = vmatpush2.msra.mxu0 0.0
    %295 = vmatprep.subr.mxu0 0.0
    %296 = vmatpush2.msra.mxu0 0.0
    %297 = vmatprep.subr.mxu0 0.0
    %298 = vmatpush2.msra.mxu0 0.0
    %299 = vmatprep.subr.mxu0 0.0
    %300 = vmatpush2.msra.mxu0 0.0
    %301 = vmatprep.subr.mxu0 0.0
    %302 = vmatpush2.msra.mxu0 0.0
    %303 = vmatprep.subr.mxu0 0.0
    %304 = vmatpush2.msra.mxu0 0.0
    %305 = vmatprep.subr.mxu0 0.0
    %306 = vmatpush2.msra.mxu0 0.0
    %307 = vmatprep.subr.mxu0 0.0
    %308 = vmatpush2.msra.mxu0 0.0
    %309 = vmatprep.subr.mxu0 0.0
    %310 = vmatpush2.msra.mxu0 0.0
    %311 = vmatprep.subr.mxu0 0.0
    %312 = vmatpush2.msra.mxu0 0.0
    %313 = vmatprep.subr.mxu0 0.0
    %314 = vmatpush2.msra.mxu0 0.0
    %315 = vmatprep.subr.mxu0 0.0
    %316 = vmatpush2.msra.mxu0 0.0
    %317 = vmatprep.subr.mxu0 0.0
    %318 = vmatpush2.msra.mxu0 0.0
    %319 = vmatprep.mubr.f32.mxu0 0.0
    %320 = vmatmul.mubr.f32.gmra.mxu0 %v253
    %v321 = vpop.f32.mrf.mxu0
    %v322 = vadd.f32 %v250, %v321
    %v323 = vpop.f32.mrf.mxu0
    %324 = vdwg.mxu0
    %v325 = vmax.f32 %v322, 0.0
    %v326 = vsel %vm116, %v322, -inf
    %327 = vmax.xlane.f32.xlu0 %v326
    %v328 = vpop.xlane.xlu0 %327
    %v329 = vsub.f32 %v322, %v328
    %v330 = vmul.f32 %v329, 1.442695
    %v331 = vpow.pop %v330
    %333 = vrot.lane.b32.xlu0 %v331, 64
    %v334 = vpop.permute.xlu0 %333
    %v336 = vsel %vm127, %v334, 0.0
    %337 = vadd.xlane.f32.xlu0 %v336
    %v338 = vpop.xlane.xlu0 %337
    %v339 = vrcp.pop %v338
    %v340 = vmul.f32 %v331, %v339
    %s341 = scalar_lea.vmem %s5, 64
    %v342 = vld [vmem:[%s341] sm:$0xff]
    %v343 = vld [vmem:[%s341 + $0x8] sm:$0xff]
    %v344 = vld [vmem:[%s341 + $0x10] sm:$0xff]
    %v345 = vld [vmem:[%s341 + $0x18] sm:$0xff]
    %v346 = vld [vmem:[%s341 + $0x20] sm:$0xff]
    %v347 = vld [vmem:[%s341 + $0x28] sm:$0xff]
    %v348 = vld [vmem:[%s341 + $0x30] sm:$0xff]
    %v349 = vld [vmem:[%s341 + $0x38] sm:$0xff]
    %s350 = scalar_lea.vmem %s6, 1
    %v351 = vld [vmem:[%s350] sm:$0x1]
    %v353 = vlaneseq
    %v354 = vshrl.u32 %v353, 7
    %v355 = vsub.s32 0, %v354
    %v356 = vrot.slane %v351, %v355
    %v359 = vsel %vm148, %v325, 0
    %361 = vmatprep.subr.mxu0 0.0
    %362 = vmatpush1.msra.mxu0 0.0
    %363 = vmatprep.subr.mxu0 0.0
    %364 = vmatpush1.msra.mxu0 0.0
    %365 = vmatprep.subr.mxu0 0.0
    %366 = vmatpush1.msra.mxu0 0.0
    %367 = vmatprep.subr.mxu0 0.0
    %368 = vmatpush1.msra.mxu0 0.0
    %369 = vmatprep.subr.mxu0 0.0
    %370 = vmatpush1.msra.mxu0 0.0
    %371 = vmatprep.subr.mxu0 0.0
    %372 = vmatpush1.msra.mxu0 0.0
    %373 = vmatprep.subr.mxu0 0.0
    %374 = vmatpush1.msra.mxu0 0.0
    %375 = vmatprep.subr.mxu0 0.0
    %376 = vmatpush1.msra.mxu0 0.0
    %377 = vmatprep.subr.mxu0 0.0
    %378 = vmatpush1.msra.mxu0 %v349
    %379 = vmatprep.subr.mxu0 0.0
    %380 = vmatpush1.msra.mxu0 %v348
    %381 = vmatprep.subr.mxu0 0.0
    %382 = vmatpush1.msra.mxu0 %v347
    %383 = vmatprep.subr.mxu0 0.0
    %384 = vmatpush1.msra.mxu0 %v346
    %385 = vmatprep.subr.mxu0 0.0
    %386 = vmatpush1.msra.mxu0 %v345
    %387 = vmatprep.subr.mxu0 0.0
    %388 = vmatpush1.msra.mxu0 %v344
    %389 = vmatprep.subr.mxu0 0.0
    %390 = vmatpush1.msra.mxu0 %v343
    %391 = vmatprep.subr.mxu0 0.0
    %392 = vmatpush1.msra.mxu0 %v342
    %393 = vmatprep.subr.mxu0 0.0
    %394 = vmatpush2.msra.mxu0 0.0
    %395 = vmatprep.subr.mxu0 0.0
    %396 = vmatpush2.msra.mxu0 0.0
    %397 = vmatprep.subr.mxu0 0.0
    %398 = vmatpush2.msra.mxu0 0.0
    %399 = vmatprep.subr.mxu0 0.0
    %400 = vmatpush2.msra.mxu0 0.0
    %401 = vmatprep.subr.mxu0 0.0
    %402 = vmatpush2.msra.mxu0 0.0
    %403 = vmatprep.subr.mxu0 0.0
    %404 = vmatpush2.msra.mxu0 0.0
    %405 = vmatprep.subr.mxu0 0.0
    %406 = vmatpush2.msra.mxu0 0.0
    %407 = vmatprep.subr.mxu0 0.0
    %408 = vmatpush2.msra.mxu0 0.0
    %409 = vmatprep.subr.mxu0 0.0
    %410 = vmatpush2.msra.mxu0 0.0
    %411 = vmatprep.subr.mxu0 0.0
    %412 = vmatpush2.msra.mxu0 0.0
    %413 = vmatprep.subr.mxu0 0.0
    %414 = vmatpush2.msra.mxu0 0.0
    %415 = vmatprep.subr.mxu0 0.0
    %416 = vmatpush2.msra.mxu0 0.0
    %417 = vmatprep.subr.mxu0 0.0
    %418 = vmatpush2.msra.mxu0 0.0
    %419 = vmatprep.subr.mxu0 0.0
    %420 = vmatpush2.msra.mxu0 0.0
    %421 = vmatprep.subr.mxu0 0.0
    %422 = vmatpush2.msra.mxu0 0.0
    %423 = vmatprep.subr.mxu0 0.0
    %424 = vmatpush2.msra.mxu0 0.0
    %425 = vmatprep.mubr.f32.mxu0 0.0
    %426 = vmatmul.mubr.f32.gmra.mxu0 %v359
    %v427 = vpop.f32.mrf.mxu0
    %v428 = vadd.f32 %v356, %v427
    %v429 = vpop.f32.mrf.mxu0
    %430 = vdwg.mxu0
    %432 = vset.pattern.permute.xlu0 64
    %433 = vperm.xlu0 %432, %v340
    %v434 = vpop.permute.xlu0 %433
    %v436 = vmul.f32 %v434, %v428
    %v437 = vadd.f32 %v436, 0.0
    %438 = vset.pattern.permute.xlu0 65
    %439 = vperm.xlu0 %438, %v340
    %v440 = vpop.permute.xlu0 %439
    %v442 = vmul.f32 %v440, %v428
    %444 = vrot.lane.b32.xlu0 %v442, 112
    %v445 = vpop.permute.xlu0 %444
    %v447 = vadd.f32 %v437, %v445
    %s448 = scalar_lea.vmem %s3, 64
    %v449 = vld [vmem:[%s448] sm:$0xff]
    %v450 = vld [vmem:[%s448 + $0x8] sm:$0xff]
    %v451 = vld [vmem:[%s448 + $0x10] sm:$0xff]
    %v452 = vld [vmem:[%s448 + $0x18] sm:$0xff]
    %s453 = scalar_lea.vmem %s4, 2
    %v454 = vld [vmem:[%s453] sm:$0x1]
    %v456 = vlaneseq
    %v457 = vshrl.u32 %v456, 7
    %v458 = vsub.s32 0, %v457
    %v459 = vrot.slane %v454, %v458
    %v462 = vsel %vm41, %v29, 0
    %464 = vmatprep.subr.mxu0 0.0
    %465 = vmatpush1.msra.mxu0 0.0
    %466 = vmatprep.subr.mxu0 0.0
    %467 = vmatpush1.msra.mxu0 0.0
    %468 = vmatprep.subr.mxu0 0.0
    %469 = vmatpush1.msra.mxu0 0.0
    %470 = vmatprep.subr.mxu0 0.0
    %471 = vmatpush1.msra.mxu0 0.0
    %472 = vmatprep.subr.mxu0 0.0
    %473 = vmatpush1.msra.mxu0 0.0
    %474 = vmatprep.subr.mxu0 0.0
    %475 = vmatpush1.msra.mxu0 0.0
    %476 = vmatprep.subr.mxu0 0.0
    %477 = vmatpush1.msra.mxu0 0.0
    %478 = vmatprep.subr.mxu0 0.0
    %479 = vmatpush1.msra.mxu0 0.0
    %480 = vmatprep.subr.mxu0 0.0
    %481 = vmatpush1.msra.mxu0 0.0
    %482 = vmatprep.subr.mxu0 0.0
    %483 = vmatpush1.msra.mxu0 0.0
    %484 = vmatprep.subr.mxu0 0.0
    %485 = vmatpush1.msra.mxu0 0.0
    %486 = vmatprep.subr.mxu0 0.0
    %487 = vmatpush1.msra.mxu0 0.0
    %488 = vmatprep.subr.mxu0 0.0
    %489 = vmatpush1.msra.mxu0 %v452
    %490 = vmatprep.subr.mxu0 0.0
    %491 = vmatpush1.msra.mxu0 %v451
    %492 = vmatprep.subr.mxu0 0.0
    %493 = vmatpush1.msra.mxu0 %v450
    %494 = vmatprep.subr.mxu0 0.0
    %495 = vmatpush1.msra.mxu0 %v449
    %496 = vmatprep.subr.mxu0 0.0
    %497 = vmatpush2.msra.mxu0 0.0
    %498 = vmatprep.subr.mxu0 0.0
    %499 = vmatpush2.msra.mxu0 0.0
    %500 = vmatprep.subr.mxu0 0.0
    %501 = vmatpush2.msra.mxu0 0.0
    %502 = vmatprep.subr.mxu0 0.0
    %503 = vmatpush2.msra.mxu0 0.0
    %504 = vmatprep.subr.mxu0 0.0
    %505 = vmatpush2.msra.mxu0 0.0
    %506 = vmatprep.subr.mxu0 0.0
    %507 = vmatpush2.msra.mxu0 0.0
    %508 = vmatprep.subr.mxu0 0.0
    %509 = vmatpush2.msra.mxu0 0.0
    %510 = vmatprep.subr.mxu0 0.0
    %511 = vmatpush2.msra.mxu0 0.0
    %512 = vmatprep.subr.mxu0 0.0
    %513 = vmatpush2.msra.mxu0 0.0
    %514 = vmatprep.subr.mxu0 0.0
    %515 = vmatpush2.msra.mxu0 0.0
    %516 = vmatprep.subr.mxu0 0.0
    %517 = vmatpush2.msra.mxu0 0.0
    %518 = vmatprep.subr.mxu0 0.0
    %519 = vmatpush2.msra.mxu0 0.0
    %520 = vmatprep.subr.mxu0 0.0
    %521 = vmatpush2.msra.mxu0 0.0
    %522 = vmatprep.subr.mxu0 0.0
    %523 = vmatpush2.msra.mxu0 0.0
    %524 = vmatprep.subr.mxu0 0.0
    %525 = vmatpush2.msra.mxu0 0.0
    %526 = vmatprep.subr.mxu0 0.0
    %527 = vmatpush2.msra.mxu0 0.0
    %528 = vmatprep.mubr.f32.mxu0 0.0
    %529 = vmatmul.mubr.f32.gmra.mxu0 %v462
    %v530 = vpop.f32.mrf.mxu0
    %v531 = vadd.f32 %v459, %v530
    %v532 = vpop.f32.mrf.mxu0
    %533 = vdwg.mxu0
    %v534 = vmax.f32 %v531, 0.0
    %v535 = vsel %vm116, %v531, -inf
    %536 = vmax.xlane.f32.xlu0 %v535
    %v537 = vpop.xlane.xlu0 %536
    %v538 = vsub.f32 %v531, %v537
    %v539 = vmul.f32 %v538, 1.442695
    %v540 = vpow.pop %v539
    %542 = vrot.lane.b32.xlu0 %v540, 64
    %v543 = vpop.permute.xlu0 %542
    %v545 = vsel %vm127, %v543, 0.0
    %546 = vadd.xlane.f32.xlu0 %v545
    %v547 = vpop.xlane.xlu0 %546
    %v548 = vrcp.pop %v547
    %v549 = vmul.f32 %v540, %v548
    %s550 = scalar_lea.vmem %s5, 128
    %v551 = vld [vmem:[%s550] sm:$0xff]
    %v552 = vld [vmem:[%s550 + $0x8] sm:$0xff]
    %v553 = vld [vmem:[%s550 + $0x10] sm:$0xff]
    %v554 = vld [vmem:[%s550 + $0x18] sm:$0xff]
    %v555 = vld [vmem:[%s550 + $0x20] sm:$0xff]
    %v556 = vld [vmem:[%s550 + $0x28] sm:$0xff]
    %v557 = vld [vmem:[%s550 + $0x30] sm:$0xff]
    %v558 = vld [vmem:[%s550 + $0x38] sm:$0xff]
    %s559 = scalar_lea.vmem %s6, 2
    %v560 = vld [vmem:[%s559] sm:$0x1]
    %v562 = vlaneseq
    %v563 = vshrl.u32 %v562, 7
    %v564 = vsub.s32 0, %v563
    %v565 = vrot.slane %v560, %v564
    %v568 = vsel %vm148, %v534, 0
    %570 = vmatprep.subr.mxu0 0.0
    %571 = vmatpush1.msra.mxu0 0.0
    %572 = vmatprep.subr.mxu0 0.0
    %573 = vmatpush1.msra.mxu0 0.0
    %574 = vmatprep.subr.mxu0 0.0
    %575 = vmatpush1.msra.mxu0 0.0
    %576 = vmatprep.subr.mxu0 0.0
    %577 = vmatpush1.msra.mxu0 0.0
    %578 = vmatprep.subr.mxu0 0.0
    %579 = vmatpush1.msra.mxu0 0.0
    %580 = vmatprep.subr.mxu0 0.0
    %581 = vmatpush1.msra.mxu0 0.0
    %582 = vmatprep.subr.mxu0 0.0
    %583 = vmatpush1.msra.mxu0 0.0
    %584 = vmatprep.subr.mxu0 0.0
    %585 = vmatpush1.msra.mxu0 0.0
    %586 = vmatprep.subr.mxu0 0.0
    %587 = vmatpush1.msra.mxu0 %v558
    %588 = vmatprep.subr.mxu0 0.0
    %589 = vmatpush1.msra.mxu0 %v557
    %590 = vmatprep.subr.mxu0 0.0
    %591 = vmatpush1.msra.mxu0 %v556
    %592 = vmatprep.subr.mxu0 0.0
    %593 = vmatpush1.msra.mxu0 %v555
    %594 = vmatprep.subr.mxu0 0.0
    %595 = vmatpush1.msra.mxu0 %v554
    %596 = vmatprep.subr.mxu0 0.0
    %597 = vmatpush1.msra.mxu0 %v553
    %598 = vmatprep.subr.mxu0 0.0
    %599 = vmatpush1.msra.mxu0 %v552
    %600 = vmatprep.subr.mxu0 0.0
    %601 = vmatpush1.msra.mxu0 %v551
    %602 = vmatprep.subr.mxu0 0.0
    %603 = vmatpush2.msra.mxu0 0.0
    %604 = vmatprep.subr.mxu0 0.0
    %605 = vmatpush2.msra.mxu0 0.0
    %606 = vmatprep.subr.mxu0 0.0
    %607 = vmatpush2.msra.mxu0 0.0
    %608 = vmatprep.subr.mxu0 0.0
    %609 = vmatpush2.msra.mxu0 0.0
    %610 = vmatprep.subr.mxu0 0.0
    %611 = vmatpush2.msra.mxu0 0.0
    %612 = vmatprep.subr.mxu0 0.0
    %613 = vmatpush2.msra.mxu0 0.0
    %614 = vmatprep.subr.mxu0 0.0
    %615 = vmatpush2.msra.mxu0 0.0
    %616 = vmatprep.subr.mxu0 0.0
    %617 = vmatpush2.msra.mxu0 0.0
    %618 = vmatprep.subr.mxu0 0.0
    %619 = vmatpush2.msra.mxu0 0.0
    %620 = vmatprep.subr.mxu0 0.0
    %621 = vmatpush2.msra.mxu0 0.0
    %622 = vmatprep.subr.mxu0 0.0
    %623 = vmatpush2.msra.mxu0 0.0
    %624 = vmatprep.subr.mxu0 0.0
    %625 = vmatpush2.msra.mxu0 0.0
    %626 = vmatprep.subr.mxu0 0.0
    %627 = vmatpush2.msra.mxu0 0.0
    %628 = vmatprep.subr.mxu0 0.0
    %629 = vmatpush2.msra.mxu0 0.0
    %630 = vmatprep.subr.mxu0 0.0
    %631 = vmatpush2.msra.mxu0 0.0
    %632 = vmatprep.subr.mxu0 0.0
    %633 = vmatpush2.msra.mxu0 0.0
    %634 = vmatprep.mubr.f32.mxu0 0.0
    %635 = vmatmul.mubr.f32.gmra.mxu0 %v568
    %v636 = vpop.f32.mrf.mxu0
    %v637 = vadd.f32 %v565, %v636
    %v638 = vpop.f32.mrf.mxu0
    %639 = vdwg.mxu0
    %641 = vset.pattern.permute.xlu0 64
    %642 = vperm.xlu0 %641, %v549
    %v643 = vpop.permute.xlu0 %642
    %v645 = vmul.f32 %v643, %v637
    %v646 = vadd.f32 %v645, 0.0
    %647 = vset.pattern.permute.xlu0 65
    %648 = vperm.xlu0 %647, %v549
    %v649 = vpop.permute.xlu0 %648
    %v651 = vmul.f32 %v649, %v637
    %653 = vrot.lane.b32.xlu0 %v651, 112
    %v654 = vpop.permute.xlu0 %653
    %v656 = vadd.f32 %v646, %v654
    %658 = vrot.lane.b32.xlu0 %v447, 16
    %v659 = vpop.permute.xlu0 %658
    %662 = vrot.lane.b32.xlu0 %v656, 32
    %v663 = vpop.permute.xlu0 %662
    %vm665 = vcmask 130048
    %v666 = vsel %vm665, %v238, %v659
    %v667 = vsel %vm41, %v666, %v663
    %vm668 = vcmask 392192
    %669 = vst.msk [vmem:[#allocation2] sm:$0xff] %vm668, %v667
    // Predicated region
    $region30: #{tpu_custom_call.1} parent=1 // pred_check
      _
    $region31: #{tpu_custom_call.1} parent=1 // pred_check_branch
      %671 = sbr.rel (0) target = $region33
    $region32: #{tpu_custom_call.1} parent=1 // pred_region
      %s673 = ssub.s32 128, 128
      %674 = vsyncadd [#allocation3], %s673
      %s676 = sshll.u32 [#allocation2], 4
      %s677 = int_to_ptr.vmem [resolvable:$true] %s676
      %679 = dma.vmem_to_hbm [thread:$0]  %s677, 128, %s7, [#allocation3]
    $region33: #{tpu_custom_call.1} parent=1 // pred_fallthru
      _
    // Predicated region
    $region34: #{tpu_custom_call.1} parent=1 // pred_check
      _
    $region35: #{tpu_custom_call.1} parent=1 // pred_check_branch
      %681 = sbr.rel (0) target = $region37
    $region36: #{tpu_custom_call.1} parent=1 // pred_region
      %682 = dma.done [#allocation3], 128
    $region37: #{tpu_custom_call.1} parent=1 // pred_fallthru
      _
    %683 = vsyncpa [#allocation3], 1

</llo_original>
